<compile_context>
chip_gen: v7x
topology: tpu7x:2x2x1
jax: 0.10.0
libtpu: 0.0.40
codegen_flags: <defaults>
</compile_context>

<pallas_src>
import functools

import jax
import jax.numpy as jnp
from jax.experimental import pallas as pl
from jax.experimental.pallas import tpu as pltpu


def _round_up(n, m):
    return ((n + m - 1) // m) * m


def _round_down(n, m):
    return (n // m) * m


# Native sublane packing per itemsize: f32 -> 8 rows/vreg, bf16 -> 16, int8/fp8 -> 32.
_SUBLANE_MULTIPLE = {4: 8, 2: 16, 1: 32}


# ----------------------------------------------------------------------------
# Kernels
# ----------------------------------------------------------------------------
def _chomp_rows_kernel(x_ref, o_ref, *, L_out):
    # x_ref: (tile_r, in_w) with in_w >= L_out; o_ref: (tile_r, L_out).
    # Static lane slice + lane-dense store (output last dim == full L_out).
    # For L_out < 128 the store is lane-masked, but HBM DMA still dominates at
    # those sizes, so rows are not repacked into lane-dense groups here.
    o_ref[...] = x_ref[:, :L_out]


def _chomp_tiles_kernel(x_ref, o_ref):
    # x_ref / o_ref: (tile_r, tile_l) covering identical element offsets.
    o_ref[...] = x_ref[...]


# ----------------------------------------------------------------------------
# Wrapper
# ----------------------------------------------------------------------------
def chomp1d(x, chomp_size, *, block_bytes=4 << 20, vmem_limit_bytes=48 << 20):
    """Pallas TPU Chomp1d: x[:, :, :-chomp_size], contiguous.

    block_bytes: per-block VMEM budget.  4 MiB works on v5e/v6e/v7x; on v7x up
      to ~8 MiB is fine as long as ~4*block_bytes stays well under its 64 MiB
      VMEM.  vmem_limit_bytes overrides the scoped-VMEM defaults
      (16/32/32 MiB on v5e/v6e/v7x) while staying under v7x's physical 64 MiB.
    """
    # Strict PyTorch x[:, :, :-0] would yield an empty tensor; reject instead
    # of silently producing either an empty or identity result.
    assert chomp_size > 0, "chomp_size must be positive"
    B, C, L = x.shape
    L_out = L - chomp_size
    assert L_out > 0, "chomp_size must be smaller than the time dimension"

    R = B * C
    x2 = x.reshape(R, L)
    itemsize = x2.dtype.itemsize
    sub = _SUBLANE_MULTIPLE.get(itemsize, 8)

    # Input block lane width: shrink to the 128-aligned cover of L_out when it
    # still fits inside L, so the chomped tail is never read from HBM.
    in_w = _round_up(L_out, 128)
    if in_w > L:
        in_w = L
    bytes_per_row = max(in_w, L_out) * itemsize
    rows_in_budget = block_bytes // bytes_per_row

    if rows_in_budget >= sub:
        # ---- Full-row path: 1-D grid over row tiles, full chomped lane extent
        # per block (fully contiguous in/out DMAs, lane-dense output store).
        tile_r = _round_down(rows_in_budget, sub)
        if tile_r >= R:
            # Whole problem fits one block: still split rows two ways so v7x's
            # two TensorCores each get a tile (one extra ~0.35 us step elsewhere).
            tile_r = _round_up(pl.cdiv(R, 2), sub) if R >= 2 * sub else R
        grid = (pl.cdiv(R, tile_r),)
        out2 = pl.pallas_call(
            functools.partial(_chomp_rows_kernel, L_out=L_out),
            out_shape=jax.ShapeDtypeStruct((R, L_out), x.dtype),
            grid=grid,
            in_specs=[pl.BlockSpec((tile_r, in_w), lambda i: (i, 0))],
            out_specs=pl.BlockSpec((tile_r, L_out), lambda i: (i, 0)),
            compiler_params=pltpu.CompilerParams(
                dimension_semantics=("parallel",),
                vmem_limit_bytes=vmem_limit_bytes,
            ),
        )(x2)
    else:
        # ---- Very long time axis: 2-D grid, balanced 128-multiple lane tiles.
        tile_r = R if R <= 8 * sub else 8 * sub
        lane_cap = max(128, _round_down(block_bytes // (tile_r * itemsize), 128))
        n_lane_blocks = pl.cdiv(L_out, lane_cap)
        # Even split so the remainder block is not near-empty (balanced work
        # for v7x two-core sharding; avoids a heavily masked tail store).
        tile_l = min(_round_up(pl.cdiv(L_out, n_lane_blocks), 128), lane_cap)
        grid = (pl.cdiv(R, tile_r), pl.cdiv(L_out, tile_l))
        out2 = pl.pallas_call(
            _chomp_tiles_kernel,
            out_shape=jax.ShapeDtypeStruct((R, L_out), x.dtype),
            grid=grid,
            in_specs=[pl.BlockSpec((tile_r, tile_l), lambda i, j: (i, j))],
            out_specs=pl.BlockSpec((tile_r, tile_l), lambda i, j: (i, j)),
            compiler_params=pltpu.CompilerParams(
                dimension_semantics=("parallel", "parallel"),
                vmem_limit_bytes=vmem_limit_bytes,
            ),
        )(x2)

    return out2.reshape(B, C, L_out)


# ----------------------------------------------------------------------------
if __name__ == "__main__":
    key = jax.random.PRNGKey(0)

    # 1) Small TCN-typical case: (batch, channels, time) = (2, 4, 16), chomp=3.
    B, C, L, chomp = 2, 4, 16, 3
    x = jax.random.normal(key, (B, C, L), dtype=jnp.float32)
    out = jax.block_until_ready(chomp1d(x, chomp))
    ref = x[:, :, :-chomp]
    assert out.shape == (B, C, L - chomp), out.shape
    assert jnp.array_equal(out, ref), "case 1 mismatch"

    # 2) Shrunk input block (round_up(L_out,128) < L) + multiple row tiles
    #    (exercises the v7x two-tile split and the padded last row block).
    B2, C2, L2, chomp2 = 4, 64, 300, 50
    x2 = jax.random.normal(jax.random.PRNGKey(0), (B2, C2, L2), dtype=jnp.float32)
    out2 = jax.block_until_ready(chomp1d(x2, chomp2))
    ref2 = x2[:, :, :-chomp2]
    assert out2.shape == (B2, C2, L2 - chomp2), out2.shape
    assert jnp.array_equal(out2, ref2), "case 2 mismatch"

    # 3) Forced 2-D lane-tiled path (tiny block budget): multiple row tiles,
    #    L_out % tile_l != 0, and the last lane block extends past L_out.
    B3, C3, L3, chomp3 = 5, 16, 2000, 100
    x3 = jax.random.normal(jax.random.PRNGKey(0), (B3, C3, L3), dtype=jnp.float32)
    out3 = jax.block_until_ready(chomp1d(x3, chomp3, block_bytes=16 << 10))
    ref3 = x3[:, :, :-chomp3]
    assert out3.shape == (B3, C3, L3 - chomp3), out3.shape
    assert jnp.array_equal(out3, ref3), "case 3 mismatch"

    # 4) bf16 (sub-32-bit sublane packing) on the full-row path.
    B4, C4, L4, chomp4 = 2, 4, 640, 37
    x4 = jax.random.normal(jax.random.PRNGKey(0), (B4, C4, L4), dtype=jnp.bfloat16)
    out4 = jax.block_until_ready(chomp1d(x4, chomp4))
    ref4 = x4[:, :, :-chomp4]
    assert out4.shape == (B4, C4, L4 - chomp4), out4.shape
    assert jnp.array_equal(out4, ref4), "case 4 mismatch"

    print("KERNEL_OK")
</pallas_src>

<mosaic_0001>
module attributes {stable_mosaic.version = 11 : i64} {
  func.func @_chomp_rows_kernel(%arg0: i32, %arg1: memref<8x16xf32, #tpu.memory_space<vmem>>, %arg2: memref<8x13xf32, #tpu.memory_space<vmem>>) attributes {dimension_semantics = [#tpu.dimension_semantics<parallel>], iteration_bounds = array<i64: 1>, scalar_prefetch = 0 : i64, scratch_operands = 0 : i64, tpu.core_type = #tpu.core_type<tc>, window_params = [{transform_indices = @transform_0, window_bounds = array<i64: 8, 16>}, {transform_indices = @transform_1, window_bounds = array<i64: 8, 13>}]} {
    %c0 = arith.constant 0 : index
    %c0_0 = arith.constant 0 : index
    %0 = vector.load %arg1[%c0, %c0_0] : memref<8x16xf32, #tpu.memory_space<vmem>>, vector<8x13xf32>
    %c0_1 = arith.constant 0 : index
    %c0_2 = arith.constant 0 : index
    %1 = vector.load %arg2[%c0_1, %c0_2] : memref<8x13xf32, #tpu.memory_space<vmem>>, vector<8x13xf32>
    tpu.vector_store %arg2[%c0_1, %c0_2], %0 {strides = array<i32>} : memref<8x13xf32, #tpu.memory_space<vmem>>, vector<8x13xf32>,
    return
  }
  func.func @transform_0(%arg0: i32) -> (i32, i32) {
    %c0_i32 = arith.constant 0 : i32
    %c0_i32_0 = arith.constant 0 : i32
    return %arg0, %c0_i32 : i32, i32
  }
  func.func @transform_1(%arg0: i32) -> (i32, i32) {
    %c0_i32 = arith.constant 0 : i32
    %c0_i32_0 = arith.constant 0 : i32
    return %arg0, %c0_i32 : i32, i32
  }
}

</mosaic_0001>

<llo_original>
// kernel: tpu_custom_call.1
$region0: #{tpu_custom_call.1}
  #allocation0 [shape = 'u32[]', space=smem, size = 0x4, offset = 0x4, fixed_abs, tag = 'smem constant byte address 0x4 - core index']
  #allocation1 [shape = 'u32[144,128]{1,0:T(1,128)}', space=vmem, size = 0x12000, scoped, tag = 'internal scratch']
  %s0 = inlined_call_operand.hbm [shape: f32[8,16], index: 0, kind: input, shape index: {}]
  %s1 = inlined_call_operand.hbm [shape: f32[8,13], index: 1, kind: output, shape index: {}]
  %s2 = sld [smem:[#allocation0]]
  $region18: #{tpu_custom_call.1} parent=0
    _
  %s4 = ssub.s32 1, %s2
  %s5 = scalar_select 0, %s4, %s2
  $region1: #{tpu_custom_call.1} parent=0
    #allocation2 [shape = 'u8[4096]{0}', space=vmem, size = 0x1000, scoped, tag = 'input window, operand 0, single buffered']
    #allocation3 [shape = 's32[1]{0}', space=sflag, size = 0x4, scoped, tag = 'scoped memory for tpu_custom_call.1']
    #allocation4 [shape = 's32[1]{0}', space=sflag, size = 0x4, scoped, tag = 'scoped memory for tpu_custom_call.1']
    #allocation5 [shape = 'u8[4096]{0}', space=vmem, size = 0x1000, scoped, tag = 'output window, operand 0, single buffered']
    %6 = vsyncpa [#allocation3], 0
    %7 = vsyncpa [#allocation4], 0
    // Predicated region
    $region2: #{tpu_custom_call.1} parent=1 // pred_check
      _
    $region3: #{tpu_custom_call.1} parent=1 // pred_check_branch
      %9 = sbr.rel (0) target = $region5
    $region4: #{tpu_custom_call.1} parent=1 // pred_region
      %s11 = ssub.s32 128, 128
      %12 = vsyncadd [#allocation3], %s11
      %s14 = sshll.u32 [#allocation2], 4
      %s15 = int_to_ptr.vmem [resolvable:$true] %s14
      %17 = dma.hbm_to_vmem [thread:$0]  %s0, 128, %s15, [#allocation3]
    $region5: #{tpu_custom_call.1} parent=1 // pred_fallthru
      _
    // Predicated region
    $region6: #{tpu_custom_call.1} parent=1 // pred_check
      _
    $region7: #{tpu_custom_call.1} parent=1 // pred_check_branch
      %19 = sbr.rel (0) target = $region9
    $region8: #{tpu_custom_call.1} parent=1 // pred_region
      %20 = dma.done [#allocation3], 128
    $region9: #{tpu_custom_call.1} parent=1 // pred_fallthru
      _
    %v21 = vld [vmem:[#allocation2] sm:$0xff]
    %vm22 = vcmask 105472
    %23 = vst.msk [vmem:[#allocation5] sm:$0xff] %vm22, %v21
    // Predicated region
    $region10: #{tpu_custom_call.1} parent=1 // pred_check
      _
    $region11: #{tpu_custom_call.1} parent=1 // pred_check_branch
      %25 = sbr.rel (0) target = $region13
    $region12: #{tpu_custom_call.1} parent=1 // pred_region
      %s27 = ssub.s32 128, 128
      %28 = vsyncadd [#allocation4], %s27
      %s30 = sshll.u32 [#allocation5], 4
      %s31 = int_to_ptr.vmem [resolvable:$true] %s30
      %33 = dma.vmem_to_hbm [thread:$0]  %s31, 128, %s1, [#allocation4]
    $region13: #{tpu_custom_call.1} parent=1 // pred_fallthru
      _
    // Predicated region
    $region14: #{tpu_custom_call.1} parent=1 // pred_check
      _
    $region15: #{tpu_custom_call.1} parent=1 // pred_check_branch
      %35 = sbr.rel (0) target = $region17
    $region16: #{tpu_custom_call.1} parent=1 // pred_region
      %36 = dma.done [#allocation4], 128
    $region17: #{tpu_custom_call.1} parent=1 // pred_fallthru
      _
    %37 = vsyncpa [#allocation3], 1
    %38 = vsyncpa [#allocation4], 1

</llo_original>
